<compile_context>
chip_gen: v5e
topology: v5e:2x2
jax: 0.10.0
libtpu: 0.0.40
codegen_flags: <defaults>
</compile_context>

<pallas_src>
import functools

import jax
import jax.numpy as jnp
from jax.experimental import pallas as pl
from jax.experimental.pallas import tpu as pltpu

_LANE = 128
_MAX_COLS = 2048
_MIB = 1024 * 1024


def _h_swish_kernel_f32(x_ref, o_ref):
    # Compute in f32 (safe on every generation).
    x = x_ref[...].astype(jnp.float32)
    hs = jnp.clip(x + 3.0, 0.0, 6.0) * (1.0 / 6.0)
    o_ref[...] = (x * hs).astype(o_ref.dtype)


def _h_swish_kernel_native(x_ref, o_ref):
    # Native-dtype math (used for bf16 on v6e/v7x): fewer VPU ops, no casts.
    x = x_ref[...]
    dt = x.dtype
    hs = jnp.clip(x + jnp.asarray(3.0, dt), jnp.asarray(0.0, dt),
                  jnp.asarray(6.0, dt)) * jnp.asarray(1.0 / 6.0, dt)
    o_ref[...] = x * hs


@functools.lru_cache(maxsize=1)
def _tpu_vmem_bytes():
    """Physical VMEM per core (bytes); conservative fallback if unqueryable."""
    try:
        info = pltpu.get_tpu_info()
        for name in ("vmem_capacity_bytes", "vmem_bytes", "vmem_size_bytes"):
            v = getattr(info, name, None)
            if v:
                return int(v)
    except Exception:
        pass
    # 64 MiB is the smallest across v5e/v6e/v7x -> safe everywhere.
    return 64 * _MIB


@functools.lru_cache(maxsize=1)
def _native_bf16_ok():
    """bf16 VPU exists on v6e (Trillium) and later; v5e must upcast to f32."""
    try:
        kind = jax.devices()[0].device_kind.lower()
    except Exception:
        return False
    return any(tag in kind for tag in ("v6", "v7", "trillium"))


def _block_and_vmem_limit():
    vmem = _tpu_vmem_bytes()
    # ~1/8 of physical VMEM per block, clamped to [2 MiB, 8 MiB].  With
    # double-buffered in + out (4 buffers) that is <= vmem/2 on every chip.
    block = max(2 * _MIB, min(8 * _MIB, vmem // 8))
    # Explicit scoped-VMEM limit: 4 pipeline buffers + headroom, capped well
    # below physical VMEM (v7x: 48 of 64 MiB).
    vmem_limit = int(min(6 * block, (vmem * 3) // 4))
    return block, vmem_limit


def h_swish(x):
    """Elementwise h_swish over an arbitrary-shaped array (NCHW or anything)."""
    orig_shape = x.shape
    dtype = x.dtype
    n = int(x.size)
    if n == 0:
        return x

    flat = x.reshape(-1)
    itemsize = jnp.dtype(dtype).itemsize
    sublane = max(8, 32 // itemsize)   # 8 for f32, 16 for bf16/f16, 32 for int8

    block_bytes, vmem_limit = _block_and_vmem_limit()

    # Slab width: widest power-of-two multiple of 128 (<= 2048) leaving at least
    # `sublane` rows of real data; then shrink while it doesn't divide n so the
    # pad/slice path is skipped whenever possible.
    cols = _LANE
    while cols * 2 <= _MAX_COLS and n >= cols * 2 * sublane:
        cols *= 2
    while cols > _LANE and n % cols != 0:
        cols //= 2

    rows = pl.cdiv(n, cols)
    n_slab = rows * cols

    # Row tile sized to ~block_bytes (multiple of sublane).  rows does NOT have
    # to be a multiple of tile_rows: Pallas masks the last partial grid block.
    tile_rows = (block_bytes // (cols * itemsize)) // sublane * sublane
    tile_rows = max(sublane, min(tile_rows, pl.cdiv(rows, sublane) * sublane))

    # Keep the grid at >= 2 (preferably 4) steps for inputs above ~2 MiB so the
    # "parallel" axis shards across both TensorCores on v7x.
    total_bytes = n_slab * itemsize
    if total_bytes > 2 * _MIB and rows >= 2 * sublane:
        min_steps = 4 if (total_bytes > 8 * _MIB and rows >= 4 * sublane) else 2
        cap = max(sublane, (rows // min_steps) // sublane * sublane)
        tile_rows = min(tile_rows, cap)

    if n_slab == n:
        slab = flat.reshape(rows, cols)            # zero-copy layout change
    else:
        # Ragged tail (< cols elements): one small pad; h_swish(0) == 0 so the
        # padded region is harmless and is sliced off below.
        slab = jnp.pad(flat, (0, n_slab - n)).reshape(rows, cols)

    kernel = (_h_swish_kernel_native
              if (dtype == jnp.bfloat16 and _native_bf16_ok())
              else _h_swish_kernel_f32)

    grid = (pl.cdiv(rows, tile_rows),)

    # If a trace ever shows exposed DMA at step boundaries on v7x, a third
    # input buffer (pipeline_mode=pl.Buffered(3)) still fits the VMEM budget.
    out = pl.pallas_call(
        kernel,
        out_shape=jax.ShapeDtypeStruct((rows, cols), dtype),
        grid_spec=pltpu.PrefetchScalarGridSpec(
            num_scalar_prefetch=0,
            grid=grid,
            in_specs=[pl.BlockSpec((tile_rows, cols), lambda i: (i, 0))],
            out_specs=pl.BlockSpec((tile_rows, cols), lambda i: (i, 0)),
        ),
        compiler_params=pltpu.CompilerParams(
            dimension_semantics=("parallel",),
            vmem_limit_bytes=vmem_limit,
        ),
    )(slab)

    out_flat = out.reshape(-1)
    if n_slab != n:
        out_flat = out_flat[:n]
    return out_flat.reshape(orig_shape)


def h_swish_ref(x):
    xf = x.astype(jnp.float32)
    return (xf * (jnp.clip(xf + 3.0, 0.0, 6.0) / 6.0)).astype(x.dtype)


if __name__ == "__main__":
    key = jax.random.PRNGKey(0)

    # NCHW, exactly fills the slab (no padding path).
    x = jax.random.normal(key, (2, 4, 16, 16), dtype=jnp.float32) * 4.0
    y = jax.block_until_ready(h_swish(x))
    assert y.shape == x.shape and y.dtype == x.dtype
    assert jnp.allclose(y, h_swish_ref(x), atol=1e-6, rtol=1e-6), "f32 mismatch"

    # Awkward size exercising the ragged-tail path (partial last grid block).
    x2 = jax.random.normal(jax.random.PRNGKey(1), (3, 5, 7, 11), dtype=jnp.float32) * 4.0
    y2 = jax.block_until_ready(h_swish(x2))
    assert y2.shape == x2.shape
    assert jnp.allclose(y2, h_swish_ref(x2), atol=1e-6, rtol=1e-6), "padded mismatch"

    # bf16 stays bf16 end-to-end (native bf16 math on v6e/v7x, f32 path on v5e).
    x3 = (jax.random.normal(jax.random.PRNGKey(2), (2, 4, 16, 16), dtype=jnp.float32) * 4.0
          ).astype(jnp.bfloat16)
    y3 = jax.block_until_ready(h_swish(x3))
    assert y3.shape == x3.shape and y3.dtype == jnp.bfloat16
    assert jnp.allclose(y3.astype(jnp.float32), h_swish_ref(x3).astype(jnp.float32),
                        atol=2e-2, rtol=2e-2), "bf16 mismatch"

    print("KERNEL_OK")
</pallas_src>

<mosaic_0001>
module attributes {stable_mosaic.version = 11 : i64} {
  func.func @_h_swish_kernel_f32(%arg0: i32, %arg1: memref<8x256xf32, #tpu.memory_space<vmem>>, %arg2: memref<8x256xf32, #tpu.memory_space<vmem>>) attributes {dimension_semantics = [#tpu.dimension_semantics<parallel>], iteration_bounds = array<i64: 1>, scalar_prefetch = 0 : i64, scratch_operands = 0 : i64, tpu.core_type = #tpu.core_type<tc>, window_params = [{transform_indices = @transform_0, window_bounds = array<i64: 8, 256>}, {transform_indices = @transform_1, window_bounds = array<i64: 8, 256>}]} {
    %c0 = arith.constant 0 : index
    %c0_0 = arith.constant 0 : index
    %0 = vector.load %arg1[%c0, %c0_0] : memref<8x256xf32, #tpu.memory_space<vmem>>, vector<8x256xf32>
    %cst = arith.constant 3.000000e+00 : f32
    %1 = vector.broadcast %cst : f32 to vector<8x256xf32>
    %2 = arith.addf %0, %1 : vector<8x256xf32>
    %cst_1 = arith.constant 0.000000e+00 : f32
    %cst_2 = arith.constant 6.000000e+00 : f32
    %3 = vector.broadcast %cst_1 : f32 to vector<8x256xf32>
    %4 = arith.maximumf %3, %2 : vector<8x256xf32>
    %5 = vector.broadcast %cst_2 : f32 to vector<8x256xf32>
    %6 = arith.minimumf %5, %4 : vector<8x256xf32>
    %cst_3 = arith.constant 0.166666672 : f32
    %7 = vector.broadcast %cst_3 : f32 to vector<8x256xf32>
    %8 = arith.mulf %6, %7 : vector<8x256xf32>
    %9 = arith.mulf %0, %8 : vector<8x256xf32>
    %c0_4 = arith.constant 0 : index
    %c0_5 = arith.constant 0 : index
    %10 = vector.load %arg2[%c0_4, %c0_5] : memref<8x256xf32, #tpu.memory_space<vmem>>, vector<8x256xf32>
    tpu.vector_store %arg2[%c0_4, %c0_5], %9 {strides = array<i32>} : memref<8x256xf32, #tpu.memory_space<vmem>>, vector<8x256xf32>,
    return
  }
  func.func @transform_0(%arg0: i32) -> (i32, i32) {
    %c0_i32 = arith.constant 0 : i32
    %c0_i32_0 = arith.constant 0 : i32
    return %arg0, %c0_i32 : i32, i32
  }
  func.func @transform_1(%arg0: i32) -> (i32, i32) {
    %c0_i32 = arith.constant 0 : i32
    %c0_i32_0 = arith.constant 0 : i32
    return %arg0, %c0_i32 : i32, i32
  }
}

</mosaic_0001>

<llo_original>
// kernel: tpu_custom_call.1
$region0: #{tpu_custom_call.1}
  #allocation0 [shape = 'u32[]', space=smem, size = 0x4, offset = 0x4, fixed_abs, tag = 'smem constant byte address 0x4 - core index']
  #allocation1 [shape = 'u32[72,128]{1,0:T(1,128)}', space=vmem, size = 0x9000, scoped, tag = 'internal scratch']
  %s0 = inlined_call_operand.hbm [shape: f32[8,256], index: 0, kind: input, shape index: {}]
  %s1 = inlined_call_operand.hbm [shape: f32[8,256], index: 1, kind: output, shape index: {}]
  %s2 = sld [smem:[#allocation0]]
  $region18: #{tpu_custom_call.1} parent=0
    _
  %s4 = ssub.s32 1, %s2
  %s5 = scalar_select 0, %s4, %s2
  $region1: #{tpu_custom_call.1} parent=0
    #allocation2 [shape = 'u8[8192]{0}', space=vmem, size = 0x2000, scoped, tag = 'input window, operand 0, single buffered']
    #allocation3 [shape = 's32[1]{0}', space=sflag, size = 0x4, scoped, tag = 'scoped memory for tpu_custom_call.1']
    #allocation4 [shape = 's32[1]{0}', space=sflag, size = 0x4, scoped, tag = 'scoped memory for tpu_custom_call.1']
    #allocation5 [shape = 'u8[8192]{0}', space=vmem, size = 0x2000, scoped, tag = 'output window, operand 0, single buffered']
    %6 = vsyncpa [#allocation3], 0
    %7 = vsyncpa [#allocation4], 0
    // Predicated region
    $region2: #{tpu_custom_call.1} parent=1 // pred_check
      _
    $region3: #{tpu_custom_call.1} parent=1 // pred_check_branch
      %9 = sbr.rel (0) target = $region5
    $region4: #{tpu_custom_call.1} parent=1 // pred_region
      %11 = vsyncadd [#allocation3], 0
      %s13 = sshll.u32 %s0, 4
      %s14 = int_to_ptr.hbm [resolvable:$true] %s13
      %s15 = sshll.u32 [#allocation2], 4
      %s16 = int_to_ptr.vmem [resolvable:$true] %s15
      %18 = dma.hbm_to_vmem [thread:$0]  %s14, 256, %s16, [#allocation3]
    $region5: #{tpu_custom_call.1} parent=1 // pred_fallthru
      _
    // Predicated region
    $region6: #{tpu_custom_call.1} parent=1 // pred_check
      _
    $region7: #{tpu_custom_call.1} parent=1 // pred_check_branch
      %20 = sbr.rel (0) target = $region9
    $region8: #{tpu_custom_call.1} parent=1 // pred_region
      %22 = dma.done [#allocation3], 256
    $region9: #{tpu_custom_call.1} parent=1 // pred_fallthru
      _
    %v23 = vld [vmem:[#allocation2] sm:$0xff]
    %v24 = vld [vmem:[#allocation2 + $0x8] sm:$0xff]
    %v25 = vadd.f32 %v23, 3.0
    %v26 = vadd.f32 %v24, 3.0
    %v27 = vmax.f32 %v25, 0.0
    %v28 = vmax.f32 %v26, 0.0
    %v29 = vmin.f32 %v27, 6.0
    %v30 = vmin.f32 %v28, 6.0
    %v31 = vmul.f32 %v29, 0.16666667
    %v32 = vmul.f32 %v30, 0.16666667
    %v33 = vmul.f32 %v23, %v31
    %v34 = vmul.f32 %v24, %v32
    %35 = vst [vmem:[#allocation5] sm:$0xff] %v33
    %36 = vst [vmem:[#allocation5 + $0x8] sm:$0xff] %v34
    // Predicated region
    $region10: #{tpu_custom_call.1} parent=1 // pred_check
      _
    $region11: #{tpu_custom_call.1} parent=1 // pred_check_branch
      %38 = sbr.rel (0) target = $region13
    $region12: #{tpu_custom_call.1} parent=1 // pred_region
      %40 = vsyncadd [#allocation4], 0
      %s42 = sshll.u32 [#allocation5], 4
      %s43 = int_to_ptr.vmem [resolvable:$true] %s42
      %s44 = sshll.u32 %s1, 4
      %s45 = int_to_ptr.hbm [resolvable:$true] %s44
      %47 = dma.vmem_to_hbm [thread:$0]  %s43, 256, %s45, [#allocation4]
    $region13: #{tpu_custom_call.1} parent=1 // pred_fallthru
      _
    // Predicated region
    $region14: #{tpu_custom_call.1} parent=1 // pred_check
      _
    $region15: #{tpu_custom_call.1} parent=1 // pred_check_branch
      %49 = sbr.rel (0) target = $region17
    $region16: #{tpu_custom_call.1} parent=1 // pred_region
      %51 = dma.done [#allocation4], 256
    $region17: #{tpu_custom_call.1} parent=1 // pred_fallthru
      _
    %52 = vsyncpa [#allocation3], 1
    %53 = vsyncpa [#allocation4], 1

</llo_original>
